<compile_context>
chip_gen: v6e
topology: v6e:2x2x1
jax: 0.10.0
libtpu: 0.0.40
codegen_flags: <defaults>
</compile_context>

<pallas_src>
import jax
import jax.numpy as jnp
from jax.experimental import pallas as pl
from jax.experimental.pallas import tpu as pltpu


def _lambda_kernel(x_ref, o_ref):
    # elementwise hot path: relu(x) * 0.5 + 1.0
    # NOTE: the last grid block may overhang the array; OOB reads feed this
    # pure elementwise pipe (harmless) and Pallas masks the OOB stores.
    # Never combine this overhang pattern with a cross-block reduction.
    x = x_ref[...]
    o_ref[...] = (jnp.maximum(x, 0) * 0.5 + 1.0).astype(o_ref.dtype)


def _round_up(a, b):
    return ((a + b - 1) // b) * b


def lambda_layer(x, *, donate_input=False):
    """Apply func(x) = relu(x) * 0.5 + 1.0 elementwise via a Pallas kernel.

    Accepts any-shaped array (NCHW in the conv-style use case); flattens to a
    lane-dense 2D slab, streams it through a tiled elementwise kernel, and
    reshapes back.  Set donate_input=True only if the caller actually donates
    `x` (otherwise XLA inserts a defensive copy).
    """
    orig_shape = x.shape
    dtype = x.dtype
    total = x.size
    itemsize = jnp.dtype(dtype).itemsize
    # minimum sublane tile by element width (f32: 8, bf16: 16, int8/fp8: 32)
    min_sublane = {4: 8, 2: 16, 1: 32}.get(itemsize, 8)

    # Widest lane-dense last dim (multiple of 128, <= 1024) that divides the
    # element count, so the slab reshape is free in the common case.
    LANE = 128
    for cand in (1024, 512, 256, 128):
        if total % cand == 0:
            LANE = cand
            break

    lane_pad = (-total) % LANE
    flat = x.reshape(-1)
    if lane_pad:
        # TODO(synk): total not a multiple of 128 -> minimal pad of one partial
        # lane row (extra HBM pass).  Could be removed with an in-kernel
        # pltpu.store(mask=...) tail driven by a scalar-prefetched row count.
        flat = jnp.pad(flat, (0, lane_pad))
    rows = (total + lane_pad) // LANE
    slab = flat.reshape(rows, LANE)
    slab_bytes = rows * LANE * itemsize

    # ~4 MiB blocks: input + output double-buffered ~= 16 MiB of VMEM.
    TARGET_BLOCK_BYTES = 4 * 1024 * 1024
    target_rows = max(
        min_sublane,
        (TARGET_BLOCK_BYTES // (LANE * itemsize) // min_sublane) * min_sublane,
    )

    if slab_bytes <= (1 << 20):
        # Small array: single full-array block (full-dim blocks are exempt
        # from the (8,128) divisibility rule).
        tile_rows = rows
        grid_steps = 1
    else:
        # Tiled path; last block may overhang `rows` (masked by Pallas).
        tile_rows = min(target_rows, _round_up(rows, min_sublane))
        grid_steps = pl.cdiv(rows, tile_rows)
        # >= 2 (and preferably an even number of) grid steps so the "parallel"
        # axis can be split across both TensorCores on v7x.
        desired = max(2, grid_steps + (grid_steps % 2))
        if desired != grid_steps:
            tile_rows = min(
                tile_rows, _round_up(pl.cdiv(rows, desired), min_sublane)
            )
            grid_steps = pl.cdiv(rows, tile_rows)

    extra_kwargs = {}
    if donate_input:
        # Elementwise, same shape/dtype: output may alias the input buffer.
        extra_kwargs["input_output_aliases"] = {0: 0}

    out_slab = pl.pallas_call(
        _lambda_kernel,
        out_shape=jax.ShapeDtypeStruct((rows, LANE), dtype),
        grid_spec=pltpu.PrefetchScalarGridSpec(
            num_scalar_prefetch=0,
            grid=(grid_steps,),
            in_specs=[pl.BlockSpec((tile_rows, LANE), lambda i: (i, 0))],
            out_specs=pl.BlockSpec((tile_rows, LANE), lambda i: (i, 0)),
        ),
        compiler_params=pltpu.CompilerParams(
            dimension_semantics=("parallel",),
            # 4 MiB blocks x (in + out, double-buffered) ~= 16 MiB; raise the
            # scoped-VMEM limit so v5e's 16 MiB default doesn't reject/spill.
            vmem_limit_bytes=32 * 1024 * 1024,
        ),
        cost_estimate=pl.CostEstimate(
            flops=3 * total,
            transcendentals=0,
            bytes_accessed=2 * total * itemsize,
        ),
        **extra_kwargs,
    )(slab)

    out = out_slab.reshape(-1)
    if lane_pad:
        out = out[:total]
    return out.reshape(orig_shape)


def lambda_layer_ref(x):
    # pure-JAX reference of the same func
    return jnp.maximum(x, 0.0) * 0.5 + 1.0


if __name__ == "__main__":
    key = jax.random.PRNGKey(0)

    # NCHW, small shape consistent with a conv-style batch (aligned fast path:
    # no wrapper padding, single full-array block).
    x = jax.random.normal(key, (2, 4, 16, 16), dtype=jnp.float32)
    out = jax.block_until_ready(lambda_layer(x))
    ref = lambda_layer_ref(x)
    assert out.shape == ref.shape and out.dtype == ref.dtype
    assert jnp.allclose(out, ref, atol=1e-6, rtol=1e-6)

    # Ragged element count (not a multiple of 128): minimal lane-pad fallback.
    x2 = jax.random.normal(jax.random.PRNGKey(0), (2, 3, 33, 37), dtype=jnp.float32)
    out2 = jax.block_until_ready(lambda_layer(x2))
    ref2 = lambda_layer_ref(x2)
    assert out2.shape == ref2.shape and out2.dtype == ref2.dtype
    assert jnp.allclose(out2, ref2, atol=1e-6, rtol=1e-6)

    # Lane-aligned but >1 MiB and not tile-divisible: exercises the no-pad
    # tiled path with a masked (overhanging) last block and >=2 grid steps.
    x3 = jax.random.normal(jax.random.PRNGKey(0), (2, 4, 264, 128), dtype=jnp.float32)
    out3 = jax.block_until_ready(lambda_layer(x3))
    ref3 = lambda_layer_ref(x3)
    assert out3.shape == ref3.shape and out3.dtype == ref3.dtype
    assert jnp.allclose(out3, ref3, atol=1e-6, rtol=1e-6)

    print("KERNEL_OK")
</pallas_src>

<mosaic_0001>
module attributes {stable_mosaic.version = 11 : i64} {
  func.func @_lambda_kernel(%arg0: i32, %arg1: memref<2x1024xf32, #tpu.memory_space<vmem>>, %arg2: memref<2x1024xf32, #tpu.memory_space<vmem>>) attributes {dimension_semantics = [#tpu.dimension_semantics<parallel>], iteration_bounds = array<i64: 1>, scalar_prefetch = 0 : i64, scratch_operands = 0 : i64, tpu.core_type = #tpu.core_type<tc>, window_params = [{transform_indices = @transform_0, window_bounds = array<i64: 2, 1024>}, {transform_indices = @transform_1, window_bounds = array<i64: 2, 1024>}]} {
    %c0 = arith.constant 0 : index
    %c0_0 = arith.constant 0 : index
    %0 = vector.load %arg1[%c0, %c0_0] : memref<2x1024xf32, #tpu.memory_space<vmem>>, vector<2x1024xf32>
    %cst = arith.constant 0.000000e+00 : f32
    %1 = vector.broadcast %cst : f32 to vector<2x1024xf32>
    %2 = arith.maximumf %0, %1 : vector<2x1024xf32>
    %cst_1 = arith.constant 5.000000e-01 : f32
    %3 = vector.broadcast %cst_1 : f32 to vector<2x1024xf32>
    %4 = arith.mulf %2, %3 : vector<2x1024xf32>
    %cst_2 = arith.constant 1.000000e+00 : f32
    %5 = vector.broadcast %cst_2 : f32 to vector<2x1024xf32>
    %6 = arith.addf %4, %5 : vector<2x1024xf32>
    %c0_3 = arith.constant 0 : index
    %c0_4 = arith.constant 0 : index
    %7 = vector.load %arg2[%c0_3, %c0_4] : memref<2x1024xf32, #tpu.memory_space<vmem>>, vector<2x1024xf32>
    tpu.vector_store %arg2[%c0_3, %c0_4], %6 {strides = array<i32>} : memref<2x1024xf32, #tpu.memory_space<vmem>>, vector<2x1024xf32>,
    return
  }
  func.func @transform_0(%arg0: i32) -> (i32, i32) {
    %c0_i32 = arith.constant 0 : i32
    %c0_i32_0 = arith.constant 0 : i32
    return %arg0, %c0_i32 : i32, i32
  }
  func.func @transform_1(%arg0: i32) -> (i32, i32) {
    %c0_i32 = arith.constant 0 : i32
    %c0_i32_0 = arith.constant 0 : i32
    return %arg0, %c0_i32 : i32, i32
  }
}

</mosaic_0001>

<llo_original>
// kernel: tpu_custom_call.1
$region0: #{tpu_custom_call.1}
  #allocation0 [shape = 'u32[]', space=smem, size = 0x4, offset = 0x4, fixed_abs, tag = 'smem constant byte address 0x4 - core index']
  #allocation1 [shape = 'u32[144,128]{1,0:T(1,128)}', space=vmem, size = 0x12000, scoped, tag = 'internal scratch']
  %s0 = inlined_call_operand.hbm [shape: f32[2,1024], index: 0, kind: input, shape index: {}]
  %s1 = inlined_call_operand.hbm [shape: f32[2,1024], index: 1, kind: output, shape index: {}]
  %s2 = sld [smem:[#allocation0]]
  $region18: #{tpu_custom_call.1} parent=0
    _
  %s4 = ssub.s32 1, %s2
  %s5 = scalar_select 0, %s4, %s2
  $region1: #{tpu_custom_call.1} parent=0
    #allocation2 [shape = 'u8[8192]{0}', space=vmem, size = 0x2000, scoped, tag = 'input window, operand 0, single buffered']
    #allocation3 [shape = 's32[1]{0}', space=sflag, size = 0x4, scoped, tag = 'scoped memory for tpu_custom_call.1']
    #allocation4 [shape = 's32[1]{0}', space=sflag, size = 0x4, scoped, tag = 'scoped memory for tpu_custom_call.1']
    #allocation5 [shape = 'u8[8192]{0}', space=vmem, size = 0x2000, scoped, tag = 'output window, operand 0, single buffered']
    %6 = vsyncpa [#allocation3], 0
    %7 = vsyncpa [#allocation4], 0
    // Predicated region
    $region2: #{tpu_custom_call.1} parent=1 // pred_check
      _
    $region3: #{tpu_custom_call.1} parent=1 // pred_check_branch
      %9 = sbr.rel (0) target = $region5
    $region4: #{tpu_custom_call.1} parent=1 // pred_region
      %s11 = ssub.s32 256, 256
      %12 = vsyncadd [#allocation3], %s11
      %s14 = sshll.u32 [#allocation2], 4
      %s15 = int_to_ptr.vmem [resolvable:$true] %s14
      %17 = dma.hbm_to_vmem [thread:$0]  %s0, 256, %s15, [#allocation3]
    $region5: #{tpu_custom_call.1} parent=1 // pred_fallthru
      _
    // Predicated region
    $region6: #{tpu_custom_call.1} parent=1 // pred_check
      _
    $region7: #{tpu_custom_call.1} parent=1 // pred_check_branch
      %19 = sbr.rel (0) target = $region9
    $region8: #{tpu_custom_call.1} parent=1 // pred_region
      %20 = dma.done [#allocation3], 256
    $region9: #{tpu_custom_call.1} parent=1 // pred_fallthru
      _
    %v21 = vld [vmem:[#allocation2] sm:$0xff]
    %v22 = vld [vmem:[#allocation2 + $0x8] sm:$0xff]
    %v23 = vmax.f32 %v21, 0.0
    %v24 = vmax.f32 %v22, 0.0
    %v25 = vmul.f32 %v23, 0.5
    %v26 = vmul.f32 %v24, 0.5
    %v27 = vadd.f32 %v25, 1.0
    %v28 = vadd.f32 %v26, 1.0
    %29 = vst [vmem:[#allocation5] sm:$0xff] %v27
    %30 = vst [vmem:[#allocation5 + $0x8] sm:$0xff] %v28
    // Predicated region
    $region10: #{tpu_custom_call.1} parent=1 // pred_check
      _
    $region11: #{tpu_custom_call.1} parent=1 // pred_check_branch
      %32 = sbr.rel (0) target = $region13
    $region12: #{tpu_custom_call.1} parent=1 // pred_region
      %s34 = ssub.s32 256, 256
      %35 = vsyncadd [#allocation4], %s34
      %s37 = sshll.u32 [#allocation5], 4
      %s38 = int_to_ptr.vmem [resolvable:$true] %s37
      %40 = dma.vmem_to_hbm [thread:$0]  %s38, 256, %s1, [#allocation4]
    $region13: #{tpu_custom_call.1} parent=1 // pred_fallthru
      _
    // Predicated region
    $region14: #{tpu_custom_call.1} parent=1 // pred_check
      _
    $region15: #{tpu_custom_call.1} parent=1 // pred_check_branch
      %42 = sbr.rel (0) target = $region17
    $region16: #{tpu_custom_call.1} parent=1 // pred_region
      %43 = dma.done [#allocation4], 256
    $region17: #{tpu_custom_call.1} parent=1 // pred_fallthru
      _
    %44 = vsyncpa [#allocation3], 1
    %45 = vsyncpa [#allocation4], 1

</llo_original>
